<compile_context>
chip_gen: v7x
topology: tpu7x:2x2x1
jax: 0.10.0
libtpu: 0.0.40
codegen_flags: <defaults>
</compile_context>

<pallas_src>
import jax
import jax.numpy as jnp
from jax.experimental import pallas as pl
from jax.experimental.pallas import tpu as pltpu

PAD = 128          # lane-aligned width for the hidden (50) and class (10) dims
HIDDEN = 50
NUM_CLASSES = 10
MAX_TB = 2048      # ~1.5 MiB of x+out per grid step; far past step-overhead-bound


def _round_up(n, m):
    return ((n + m - 1) // m) * m


def _choose_tile(batch, max_tb):
    """Pick the batch tile: as large as possible (<= max_tb), multiple of 8, and
    at least 2 grid steps once there is enough work (v7x has 2 TensorCores)."""
    padded = _round_up(batch, 8)
    if padded <= 8:
        return 8
    n_tiles = pl.cdiv(padded, max_tb)
    if padded >= 1024:
        n_tiles = max(n_tiles, 2)
    return _round_up(pl.cdiv(padded, n_tiles), 8)


def model3_kernel(x_ref, w1_ref, w2_ref, w3_ref, bias_ref, o_ref):
    x = x_ref[...]                      # (TB, input_dim), f32
    b1 = bias_ref[0:1, :]               # (1, PAD)
    b2 = bias_ref[1:2, :]
    b3 = bias_ref[2:3, :]               # pad class lanes are -inf

    def sigmoid(z):
        # Single EUP tanh instead of exp + full-precision divide.
        return 0.5 * (jnp.tanh(0.5 * z) + 1.0)

    # layer1 / layer2: Linear + sigmoid.  Zero pad rows in w2/w3 kill the
    # sigmoid(0)=0.5 contribution of the padded hidden lanes.
    h1 = sigmoid(jnp.dot(x, w1_ref[...], preferred_element_type=jnp.float32) + b1)
    h2 = sigmoid(jnp.dot(h1, w2_ref[...], preferred_element_type=jnp.float32) + b2)

    # layer3: Linear + softmax over the class axis.  Pad class lanes have bias -inf,
    # so exp() there is exactly 0 and the 128-lane reduction equals the 10-class one.
    logits = jnp.dot(h2, w3_ref[...], preferred_element_type=jnp.float32) + b3
    m = jnp.max(logits, axis=1, keepdims=True)
    e = jnp.exp(logits - m)
    probs = e / jnp.sum(e, axis=1, keepdims=True)

    # Narrow (TB, 10) store: masked vst, 40 B/row HBM writeback (vs 512 B/row f32x128).
    o_ref[...] = probs[:, :NUM_CLASSES].astype(o_ref.dtype)


def pack_params(params):
    """Pad params ((in, out) layout) to lane-aligned, kernel-ready buffers."""
    w1, b1, w2, b2, w3, b3 = params
    d = w1.shape[0]
    f32 = jnp.float32

    w1_p = jnp.zeros((d, PAD), f32).at[:, :HIDDEN].set(w1.astype(f32))
    w2_p = jnp.zeros((PAD, PAD), f32).at[:HIDDEN, :HIDDEN].set(w2.astype(f32))
    w3_p = jnp.zeros((PAD, PAD), f32).at[:HIDDEN, :NUM_CLASSES].set(w3.astype(f32))

    b3_row = jnp.full((PAD,), -jnp.inf, f32).at[:NUM_CLASSES].set(b3.reshape(-1).astype(f32))
    bias = jnp.zeros((3, PAD), f32)
    bias = bias.at[0, :HIDDEN].set(b1.reshape(-1).astype(f32))
    bias = bias.at[1, :HIDDEN].set(b2.reshape(-1).astype(f32))
    bias = bias.at[2, :].set(b3_row)
    return w1_p, w2_p, w3_p, bias


def model3_forward(x, params, *, tb=None, max_tb=MAX_TB):
    """Fused forward pass.  Output shape is exactly (batch, 10); no wrapper pad/slice."""
    batch, in_dim = x.shape
    x = x.astype(jnp.float32)

    if tb is None:
        tb = _choose_tile(batch, max_tb)
    tb = max(8, _round_up(tb, 8))
    grid = (pl.cdiv(batch, tb),)        # ragged last tile: OOB rows masked on write

    w1, w2, w3, bias = pack_params(params)

    return pl.pallas_call(
        model3_kernel,
        out_shape=jax.ShapeDtypeStruct((batch, NUM_CLASSES), jnp.float32),
        grid=grid,
        in_specs=[
            pl.BlockSpec((tb, in_dim), lambda i: (i, 0)),   # x: tiled over batch
            pl.BlockSpec((in_dim, PAD), lambda i: (0, 0)),  # weights/biases stay
            pl.BlockSpec((PAD, PAD), lambda i: (0, 0)),     # VMEM-resident across
            pl.BlockSpec((PAD, PAD), lambda i: (0, 0)),     # all grid steps
            pl.BlockSpec((3, PAD), lambda i: (0, 0)),       # packed biases
        ],
        out_specs=pl.BlockSpec((tb, NUM_CLASSES), lambda i: (i, 0)),
        compiler_params=pltpu.CompilerParams(
            dimension_semantics=("parallel",),  # batch tiles shard across TCs on v7x
        ),
    )(x, w1, w2, w3, bias)


def init_params(key, input_dim):
    """Deterministic init mimicking nn.Linear default (uniform +/- 1/sqrt(fan_in)).
    Weights are stored as (in_features, out_features) so the forward is x @ W + b."""
    dims = [(input_dim, HIDDEN), (HIDDEN, HIDDEN), (HIDDEN, NUM_CLASSES)]
    params = []
    for fan_in, fan_out in dims:
        key, kw, kb = jax.random.split(key, 3)
        bound = 1.0 / (fan_in ** 0.5)
        w = jax.random.uniform(kw, (fan_in, fan_out), jnp.float32, -bound, bound)
        b = jax.random.uniform(kb, (1, fan_out), jnp.float32, -bound, bound)
        params += [w, b]
    return tuple(params)


def reference_forward(x, params):
    """Plain-JAX reference matching the PyTorch forward semantics exactly."""
    w1, b1, w2, b2, w3, b3 = params
    h = jax.nn.sigmoid(x @ w1 + b1)
    h = jax.nn.sigmoid(h @ w2 + b2)
    return jax.nn.softmax(h @ w3 + b3, axis=1)


if __name__ == "__main__":
    key = jax.random.PRNGKey(0)
    kx, kp = jax.random.split(key)

    batch = 8
    input_dim = 64  # sklearn digits: 8x8 images flattened to 64 features
    x = jax.random.normal(kx, (batch, input_dim), jnp.float32)
    params = init_params(kp, input_dim)

    # Main run (auto tile).
    out = jax.block_until_ready(model3_forward(x, params))
    ref = reference_forward(x, params)
    assert out.shape == (batch, NUM_CLASSES)
    assert jnp.allclose(out, ref, atol=1e-5, rtol=1e-5), "mismatch vs reference"
    assert jnp.allclose(jnp.sum(out, axis=1), 1.0, atol=1e-5), "softmax rows must sum to 1"

    # Extra check: multi-tile grid with a ragged last tile (batch not a tile multiple).
    x2 = jax.random.normal(jax.random.PRNGKey(1), (19, input_dim), jnp.float32)
    out2 = jax.block_until_ready(model3_forward(x2, params, tb=8))
    ref2 = reference_forward(x2, params)
    assert out2.shape == (19, NUM_CLASSES)
    assert jnp.allclose(out2, ref2, atol=1e-5, rtol=1e-5), "ragged-tile mismatch vs reference"

    print("KERNEL_OK")
</pallas_src>

<mosaic_0001>
module attributes {stable_mosaic.version = 11 : i64} {
  func.func @model3_kernel(%arg0: i32, %arg1: memref<8x64xf32, #tpu.memory_space<vmem>>, %arg2: memref<64x128xf32, #tpu.memory_space<vmem>>, %arg3: memref<128x128xf32, #tpu.memory_space<vmem>>, %arg4: memref<128x128xf32, #tpu.memory_space<vmem>>, %arg5: memref<3x128xf32, #tpu.memory_space<vmem>>, %arg6: memref<8x10xf32, #tpu.memory_space<vmem>>) attributes {dimension_semantics = [#tpu.dimension_semantics<parallel>], iteration_bounds = array<i64: 1>, scalar_prefetch = 0 : i64, scratch_operands = 0 : i64, tpu.core_type = #tpu.core_type<tc>, window_params = [{transform_indices = @transform_0, window_bounds = array<i64: 8, 64>}, {pipeline_mode = #tpu.pipeline_mode<synchronous>, transform_indices = @transform_1, window_bounds = array<i64: 64, 128>}, {pipeline_mode = #tpu.pipeline_mode<synchronous>, transform_indices = @transform_2, window_bounds = array<i64: 128, 128>}, {pipeline_mode = #tpu.pipeline_mode<synchronous>, transform_indices = @transform_3, window_bounds = array<i64: 128, 128>}, {pipeline_mode = #tpu.pipeline_mode<synchronous>, transform_indices = @transform_4, window_bounds = array<i64: 3, 128>}, {transform_indices = @transform_5, window_bounds = array<i64: 8, 10>}]} {
    %c0 = arith.constant 0 : index
    %c0_0 = arith.constant 0 : index
    %0 = vector.load %arg1[%c0, %c0_0] : memref<8x64xf32, #tpu.memory_space<vmem>>, vector<8x64xf32>
    %c0_1 = arith.constant 0 : index
    %c0_2 = arith.constant 0 : index
    %1 = vector.load %arg5[%c0_1, %c0_2] : memref<3x128xf32, #tpu.memory_space<vmem>>, vector<1x128xf32>
    %c1 = arith.constant 1 : index
    %c0_3 = arith.constant 0 : index
    %2 = vector.load %arg5[%c1, %c0_3] : memref<3x128xf32, #tpu.memory_space<vmem>>, vector<1x128xf32>
    %c2 = arith.constant 2 : index
    %c0_4 = arith.constant 0 : index
    %3 = vector.load %arg5[%c2, %c0_4] : memref<3x128xf32, #tpu.memory_space<vmem>>, vector<1x128xf32>
    %c0_5 = arith.constant 0 : index
    %c0_6 = arith.constant 0 : index
    %4 = vector.load %arg2[%c0_5, %c0_6] : memref<64x128xf32, #tpu.memory_space<vmem>>, vector<64x128xf32>
    %cst = arith.constant dense<0.000000e+00> : vector<8x128xf32>
    %5 = tpu.matmul %0, %4, %cst {dimension_numbers = #tpu.dot_dimension_numbers<[1], [0], [0], [1], [0, 0, 1, 1], [], []>} : vector<8x64xf32>, vector<64x128xf32>, vector<8x128xf32> -> vector<8x128xf32>
    %6 = vector.broadcast %1 : vector<1x128xf32> to vector<8x128xf32>
    %7 = arith.addf %5, %6 : vector<8x128xf32>
    %cst_7 = arith.constant 5.000000e-01 : f32
    %8 = vector.broadcast %cst_7 : f32 to vector<8x128xf32>
    %9 = arith.mulf %8, %7 : vector<8x128xf32>
    %10 = math.tanh %9 : vector<8x128xf32>
    %cst_8 = arith.constant 1.000000e+00 : f32
    %11 = vector.broadcast %cst_8 : f32 to vector<8x128xf32>
    %12 = arith.addf %10, %11 : vector<8x128xf32>
    %cst_9 = arith.constant 5.000000e-01 : f32
    %13 = vector.broadcast %cst_9 : f32 to vector<8x128xf32>
    %14 = arith.mulf %13, %12 : vector<8x128xf32>
    %c0_10 = arith.constant 0 : index
    %c0_11 = arith.constant 0 : index
    %15 = vector.load %arg3[%c0_10, %c0_11] : memref<128x128xf32, #tpu.memory_space<vmem>>, vector<128x128xf32>
    %cst_12 = arith.constant dense<0.000000e+00> : vector<8x128xf32>
    %16 = tpu.matmul %14, %15, %cst_12 {dimension_numbers = #tpu.dot_dimension_numbers<[1], [0], [0], [1], [0, 0, 1, 1], [], []>} : vector<8x128xf32>, vector<128x128xf32>, vector<8x128xf32> -> vector<8x128xf32>
    %17 = vector.broadcast %2 : vector<1x128xf32> to vector<8x128xf32>
    %18 = arith.addf %16, %17 : vector<8x128xf32>
    %cst_13 = arith.constant 5.000000e-01 : f32
    %19 = vector.broadcast %cst_13 : f32 to vector<8x128xf32>
    %20 = arith.mulf %19, %18 : vector<8x128xf32>
    %21 = math.tanh %20 : vector<8x128xf32>
    %cst_14 = arith.constant 1.000000e+00 : f32
    %22 = vector.broadcast %cst_14 : f32 to vector<8x128xf32>
    %23 = arith.addf %21, %22 : vector<8x128xf32>
    %cst_15 = arith.constant 5.000000e-01 : f32
    %24 = vector.broadcast %cst_15 : f32 to vector<8x128xf32>
    %25 = arith.mulf %24, %23 : vector<8x128xf32>
    %c0_16 = arith.constant 0 : index
    %c0_17 = arith.constant 0 : index
    %26 = vector.load %arg4[%c0_16, %c0_17] : memref<128x128xf32, #tpu.memory_space<vmem>>, vector<128x128xf32>
    %cst_18 = arith.constant dense<0.000000e+00> : vector<8x128xf32>
    %27 = tpu.matmul %25, %26, %cst_18 {dimension_numbers = #tpu.dot_dimension_numbers<[1], [0], [0], [1], [0, 0, 1, 1], [], []>} : vector<8x128xf32>, vector<128x128xf32>, vector<8x128xf32> -> vector<8x128xf32>
    %28 = vector.broadcast %3 : vector<1x128xf32> to vector<8x128xf32>
    %29 = arith.addf %27, %28 : vector<8x128xf32>
    %cst_19 = arith.constant dense<0xFF800000> : vector<8xf32>
    %30 = vector.multi_reduction <maximumf>, %29, %cst_19 [1] : vector<8x128xf32> to vector<8xf32>
    %31 = vector.shape_cast %30 : vector<8xf32> to vector<8x1xf32>
    %32 = vector.broadcast %31 : vector<8x1xf32> to vector<8x128xf32>
    %33 = arith.subf %29, %32 : vector<8x128xf32>
    %34 = math.exp %33 : vector<8x128xf32>
    %cst_20 = arith.constant dense<0.000000e+00> : vector<8xf32>
    %35 = vector.multi_reduction <add>, %34, %cst_20 [1] : vector<8x128xf32> to vector<8xf32>
    %36 = vector.shape_cast %35 : vector<8xf32> to vector<8x1xf32>
    %37 = vector.broadcast %36 : vector<8x1xf32> to vector<8x128xf32>
    %38 = arith.divf %34, %37 : vector<8x128xf32>
    %39 = vector.extract_strided_slice %38 {offsets = [0, 0], sizes = [8, 10], strides = [1, 1]} : vector<8x128xf32> to vector<8x10xf32>
    %c0_21 = arith.constant 0 : index
    %c0_22 = arith.constant 0 : index
    %40 = vector.load %arg6[%c0_21, %c0_22] : memref<8x10xf32, #tpu.memory_space<vmem>>, vector<8x10xf32>
    tpu.vector_store %arg6[%c0_21, %c0_22], %39 {strides = array<i32>} : memref<8x10xf32, #tpu.memory_space<vmem>>, vector<8x10xf32>,
    return
  }
  func.func @transform_0(%arg0: i32) -> (i32, i32) {
    %c0_i32 = arith.constant 0 : i32
    %c0_i32_0 = arith.constant 0 : i32
    return %arg0, %c0_i32 : i32, i32
  }
  func.func @transform_1(%arg0: i32) -> (i32, i32) {
    %c0_i32 = arith.constant 0 : i32
    %c0_i32_0 = arith.constant 0 : i32
    %c0_i32_1 = arith.constant 0 : i32
    return %c0_i32, %c0_i32_0 : i32, i32
  }
  func.func @transform_2(%arg0: i32) -> (i32, i32) {
    %c0_i32 = arith.constant 0 : i32
    %c0_i32_0 = arith.constant 0 : i32
    %c0_i32_1 = arith.constant 0 : i32
    return %c0_i32, %c0_i32_0 : i32, i32
  }
  func.func @transform_3(%arg0: i32) -> (i32, i32) {
    %c0_i32 = arith.constant 0 : i32
    %c0_i32_0 = arith.constant 0 : i32
    %c0_i32_1 = arith.constant 0 : i32
    return %c0_i32, %c0_i32_0 : i32, i32
  }
  func.func @transform_4(%arg0: i32) -> (i32, i32) {
    %c0_i32 = arith.constant 0 : i32
    %c0_i32_0 = arith.constant 0 : i32
    %c0_i32_1 = arith.constant 0 : i32
    return %c0_i32, %c0_i32_0 : i32, i32
  }
  func.func @transform_5(%arg0: i32) -> (i32, i32) {
    %c0_i32 = arith.constant 0 : i32
    %c0_i32_0 = arith.constant 0 : i32
    return %arg0, %c0_i32 : i32, i32
  }
}

</mosaic_0001>

<llo_original>
// kernel: tpu_custom_call.1
$region0: #{tpu_custom_call.1}
  #allocation0 [shape = 'u32[]', space=smem, size = 0x4, offset = 0x4, fixed_abs, tag = 'smem constant byte address 0x4 - core index']
  #allocation1 [shape = 'u32[144,128]{1,0:T(1,128)}', space=vmem, size = 0x12000, scoped, tag = 'internal scratch']
  %s0 = inlined_call_operand.hbm [shape: f32[8,64], index: 0, kind: input, shape index: {}]
  %s1 = inlined_call_operand.hbm [shape: f32[64,128], index: 1, kind: input, shape index: {}]
  %s2 = inlined_call_operand.hbm [shape: f32[128,128], index: 2, kind: input, shape index: {}]
  %s3 = inlined_call_operand.hbm [shape: f32[128,128], index: 3, kind: input, shape index: {}]
  %s4 = inlined_call_operand.vmem [shape: f32[3,128], index: 4, kind: input, shape index: {}]
  %s5 = inlined_call_operand.hbm [shape: f32[8,10], index: 5, kind: output, shape index: {}]
  %s6 = sld [smem:[#allocation0]]
  $region46: #{tpu_custom_call.1} parent=0
    _
  %s8 = ssub.s32 1, %s6
  %s9 = scalar_select 0, %s8, %s6
  $region1: #{tpu_custom_call.1} parent=0
    #allocation2 [shape = 'u8[4096]{0}', space=vmem, size = 0x1000, scoped, tag = 'input window, operand 0, single buffered']
    #allocation3 [shape = 's32[1]{0}', space=sflag, size = 0x4, scoped, tag = 'scoped memory for tpu_custom_call.1']
    #allocation4 [shape = 's32[1]{0}', space=sflag, size = 0x4, scoped, tag = 'scoped memory for tpu_custom_call.1']
    #allocation5 [shape = 'u8[32768]{0}', space=vmem, size = 0x8000, scoped, tag = 'input window, operand 1, single buffered']
    #allocation6 [shape = 's32[1]{0}', space=sflag, size = 0x4, scoped, tag = 'scoped memory for tpu_custom_call.1']
    #allocation7 [shape = 'u8[65536]{0}', space=vmem, size = 0x10000, scoped, tag = 'input window, operand 2, single buffered']
    #allocation8 [shape = 'u8[65536]{0}', space=vmem, size = 0x10000, scoped, tag = 'input window, operand 3, single buffered']
    #allocation9 [shape = 's32[1]{0}', space=sflag, size = 0x4, scoped, tag = 'scoped memory for tpu_custom_call.1']
    #allocation10 [shape = 'u8[4096]{0}', space=vmem, size = 0x1000, scoped, tag = 'output window, operand 0, single buffered']
    %10 = vsyncpa [#allocation3], 0
    %11 = vsyncpa [#allocation6], 0
    %12 = vsyncpa [#allocation9], 0
    %13 = vsyncpa [#allocation4], 0
    // Predicated region
    $region2: #{tpu_custom_call.1} parent=1 // pred_check
      _
    $region3: #{tpu_custom_call.1} parent=1 // pred_check_branch
      %15 = sbr.rel (0) target = $region5
    $region4: #{tpu_custom_call.1} parent=1 // pred_region
      %s17 = ssub.s32 128, 128
      %18 = vsyncadd [#allocation3], %s17
      %s20 = sshll.u32 [#allocation2], 4
      %s21 = int_to_ptr.vmem [resolvable:$true] %s20
      %23 = dma.hbm_to_vmem [thread:$0]  %s0, 128, %s21, [#allocation3]
    $region5: #{tpu_custom_call.1} parent=1 // pred_fallthru
      _
    // Predicated region
    $region6: #{tpu_custom_call.1} parent=1 // pred_check
      _
    $region7: #{tpu_custom_call.1} parent=1 // pred_check_branch
      %25 = sbr.rel (0) target = $region9
    $region8: #{tpu_custom_call.1} parent=1 // pred_region
      %s27 = ssub.s32 1024, 1024
      %28 = vsyncadd [#allocation6], %s27
      %s29 = sshll.u32 [#allocation5], 4
      %s30 = int_to_ptr.vmem [resolvable:$true] %s29
      %35 = dma.hbm_to_vmem [thread:$0]  %s1, 1024, %s30, [#allocation6], 128, 128, 8
    $region9: #{tpu_custom_call.1} parent=1 // pred_fallthru
      _
    // Predicated region
    $region10: #{tpu_custom_call.1} parent=1 // pred_check
      _
    $region11: #{tpu_custom_call.1} parent=1 // pred_check_branch
      %37 = sbr.rel (0) target = $region13
    $region12: #{tpu_custom_call.1} parent=1 // pred_region
      %s39 = ssub.s32 2048, 2048
      %40 = vsyncadd [#allocation6], %s39
      %s41 = sshll.u32 [#allocation7], 4
      %s42 = int_to_ptr.vmem [resolvable:$true] %s41
      %47 = dma.hbm_to_vmem [thread:$0]  %s2, 2048, %s42, [#allocation6], 128, 128, 8
    $region13: #{tpu_custom_call.1} parent=1 // pred_fallthru
      _
    // Predicated region
    $region14: #{tpu_custom_call.1} parent=1 // pred_check
      _
    $region15: #{tpu_custom_call.1} parent=1 // pred_check_branch
      %49 = sbr.rel (0) target = $region17
    $region16: #{tpu_custom_call.1} parent=1 // pred_region
      %s51 = ssub.s32 2048, 2048
      %52 = vsyncadd [#allocation9], %s51
      %s53 = sshll.u32 [#allocation8], 4
      %s54 = int_to_ptr.vmem [resolvable:$true] %s53
      %59 = dma.hbm_to_vmem [thread:$0]  %s3, 2048, %s54, [#allocation9], 128, 128, 8
    $region17: #{tpu_custom_call.1} parent=1 // pred_fallthru
      _
    // Predicated region
    $region18: #{tpu_custom_call.1} parent=1 // pred_check
      _
    $region19: #{tpu_custom_call.1} parent=1 // pred_check_branch
      %61 = sbr.rel (0) target = $region21
    $region20: #{tpu_custom_call.1} parent=1 // pred_region
      _
    $region21: #{tpu_custom_call.1} parent=1 // pred_fallthru
      _
    // Predicated region
    $region22: #{tpu_custom_call.1} parent=1 // pred_check
      _
    $region23: #{tpu_custom_call.1} parent=1 // pred_check_branch
      %63 = sbr.rel (0) target = $region25
    $region24: #{tpu_custom_call.1} parent=1 // pred_region
      %64 = dma.done [#allocation3], 128
    $region25: #{tpu_custom_call.1} parent=1 // pred_fallthru
      _
    // Predicated region
    $region26: #{tpu_custom_call.1} parent=1 // pred_check
      _
    $region27: #{tpu_custom_call.1} parent=1 // pred_check_branch
      %66 = sbr.rel (0) target = $region29
    $region28: #{tpu_custom_call.1} parent=1 // pred_region
      %67 = dma.done [#allocation6], 1024
    $region29: #{tpu_custom_call.1} parent=1 // pred_fallthru
      _
    // Predicated region
    $region30: #{tpu_custom_call.1} parent=1 // pred_check
      _
    $region31: #{tpu_custom_call.1} parent=1 // pred_check_branch
      %69 = sbr.rel (0) target = $region33
    $region32: #{tpu_custom_call.1} parent=1 // pred_region
      %70 = dma.done [#allocation6], 2048
    $region33: #{tpu_custom_call.1} parent=1 // pred_fallthru
      _
    // Predicated region
    $region34: #{tpu_custom_call.1} parent=1 // pred_check
      _
    $region35: #{tpu_custom_call.1} parent=1 // pred_check_branch
      %72 = sbr.rel (0) target = $region37
    $region36: #{tpu_custom_call.1} parent=1 // pred_region
      %73 = dma.done [#allocation9], 2048
    $region37: #{tpu_custom_call.1} parent=1 // pred_fallthru
      _
    %v74 = vld [vmem:[#allocation2] sm:$0xff]
    %v75 = vld [vmem:[%s4] sm:$0x1]
    %v76 = vld [vmem:[%s4 + $0x1] sm:$0x1]
    %v77 = vld [vmem:[%s4 + $0x2] sm:$0x1]
    %v78 = vld [vmem:[#allocation5] sm:$0xff]
    %v79 = vld [vmem:[#allocation5 + $0x8] sm:$0xff]
    %v80 = vld [vmem:[#allocation5 + $0x10] sm:$0xff]
    %v81 = vld [vmem:[#allocation5 + $0x18] sm:$0xff]
    %v82 = vld [vmem:[#allocation5 + $0x20] sm:$0xff]
    %v83 = vld [vmem:[#allocation5 + $0x28] sm:$0xff]
    %v84 = vld [vmem:[#allocation5 + $0x30] sm:$0xff]
    %v85 = vld [vmem:[#allocation5 + $0x38] sm:$0xff]
    %v86 = vlaneseq
    %v87 = vshrl.u32 %v86, 7
    %v88 = vsub.s32 0, %v87
    %v89 = vrot.slane %v75, %v88
    %vm90 = vcmask 523264
    %v92 = vsel %vm90, %v74, 0
    %94 = vmatprep.subr.mxu0 0.0
    %95 = vmatpush1.msra.mxu0 %v78
    %96 = vmatprep.subr.mxu0 0.0
    %97 = vmatpush1.msra.mxu0 %v79
    %98 = vmatprep.subr.mxu0 0.0
    %99 = vmatpush1.msra.mxu0 %v80
    %100 = vmatprep.subr.mxu0 0.0
    %101 = vmatpush1.msra.mxu0 %v81
    %102 = vmatprep.subr.mxu0 0.0
    %103 = vmatpush1.msra.mxu0 %v82
    %104 = vmatprep.subr.mxu0 0.0
    %105 = vmatpush1.msra.mxu0 %v83
    %106 = vmatprep.subr.mxu0 0.0
    %107 = vmatpush1.msra.mxu0 %v84
    %108 = vmatprep.subr.mxu0 0.0
    %109 = vmatpush1.msra.mxu0 %v85
    %110 = vmatprep.subr.mxu0 0.0
    %111 = vmatpush1.msra.mxu0 0.0
    %112 = vmatprep.subr.mxu0 0.0
    %113 = vmatpush1.msra.mxu0 0.0
    %114 = vmatprep.subr.mxu0 0.0
    %115 = vmatpush1.msra.mxu0 0.0
    %116 = vmatprep.subr.mxu0 0.0
    %117 = vmatpush1.msra.mxu0 0.0
    %118 = vmatprep.subr.mxu0 0.0
    %119 = vmatpush1.msra.mxu0 0.0
    %120 = vmatprep.subr.mxu0 0.0
    %121 = vmatpush1.msra.mxu0 0.0
    %122 = vmatprep.subr.mxu0 0.0
    %123 = vmatpush1.msra.mxu0 0.0
    %124 = vmatprep.subr.mxu0 0.0
    %125 = vmatpush1.msra.mxu0 0.0
    %126 = vmatprep.subr.mxu0 0.0
    %127 = vmatpush1.msra.mxu0 0.0
    %128 = vmatprep.subr.mxu0 0.0
    %129 = vmatpush1.msra.mxu0 0.0
    %130 = vmatprep.subr.mxu0 0.0
    %131 = vmatpush1.msra.mxu0 0.0
    %132 = vmatprep.subr.mxu0 0.0
    %133 = vmatpush1.msra.mxu0 0.0
    %134 = vmatprep.subr.mxu0 0.0
    %135 = vmatpush1.msra.mxu0 0.0
    %136 = vmatprep.subr.mxu0 0.0
    %137 = vmatpush1.msra.mxu0 0.0
    %138 = vmatprep.subr.mxu0 0.0
    %139 = vmatpush1.msra.mxu0 0.0
    %140 = vmatprep.subr.mxu0 0.0
    %141 = vmatpush1.msra.mxu0 0.0
    %142 = vmatprep.subr.mxu0 0.0
    %143 = vmatpush1.msra.mxu0 0.0
    %144 = vmatprep.subr.mxu0 0.0
    %145 = vmatpush1.msra.mxu0 0.0
    %146 = vmatprep.subr.mxu0 0.0
    %147 = vmatpush1.msra.mxu0 0.0
    %148 = vmatprep.subr.mxu0 0.0
    %149 = vmatpush1.msra.mxu0 0.0
    %150 = vmatprep.subr.mxu0 0.0
    %151 = vmatpush1.msra.mxu0 0.0
    %152 = vmatprep.subr.mxu0 0.0
    %153 = vmatpush1.msra.mxu0 0.0
    %154 = vmatprep.subr.mxu0 0.0
    %155 = vmatpush1.msra.mxu0 0.0
    %156 = vmatprep.subr.mxu0 0.0
    %157 = vmatpush1.msra.mxu0 0.0
    %158 = vmatprep.mubr.f32.mxu0 0.0
    %159 = vmatmul.mubr.f32.gmra.mrb[0].mxu0 %v92
    %v160 = vpop.f32.mrb[0].mxu0
    %v161 = vadd.f32 %v89, %v160
    %v162 = vpop.f32.mrb[0].mxu0
    %163 = vdwg.mxu0
    %v164 = vmul.f32 %v161, 0.5
    %v165 = vtanh.pop %v164
    %v166 = vadd.f32 %v165, 1.0
    %v167 = vmul.f32 %v166, 0.5
    %v168 = vld [vmem:[#allocation7] sm:$0xff]
    %v169 = vld [vmem:[#allocation7 + $0x8] sm:$0xff]
    %v170 = vld [vmem:[#allocation7 + $0x10] sm:$0xff]
    %v171 = vld [vmem:[#allocation7 + $0x18] sm:$0xff]
    %v172 = vld [vmem:[#allocation7 + $0x20] sm:$0xff]
    %v173 = vld [vmem:[#allocation7 + $0x28] sm:$0xff]
    %v174 = vld [vmem:[#allocation7 + $0x30] sm:$0xff]
    %v175 = vld [vmem:[#allocation7 + $0x38] sm:$0xff]
    %v176 = vld [vmem:[#allocation7 + $0x40] sm:$0xff]
    %v177 = vld [vmem:[#allocation7 + $0x48] sm:$0xff]
    %v178 = vld [vmem:[#allocation7 + $0x50] sm:$0xff]
    %v179 = vld [vmem:[#allocation7 + $0x58] sm:$0xff]
    %v180 = vld [vmem:[#allocation7 + $0x60] sm:$0xff]
    %v181 = vld [vmem:[#allocation7 + $0x68] sm:$0xff]
    %v182 = vld [vmem:[#allocation7 + $0x70] sm:$0xff]
    %v183 = vld [vmem:[#allocation7 + $0x78] sm:$0xff]
    %v184 = vlaneseq
    %v185 = vshrl.u32 %v184, 7
    %v186 = vsub.s32 0, %v185
    %v187 = vrot.slane %v76, %v186
    %188 = vmatprep.subr.mxu0 0.0
    %189 = vmatpush1.msra.mxu0 %v168
    %190 = vmatprep.subr.mxu0 0.0
    %191 = vmatpush1.msra.mxu0 %v169
    %192 = vmatprep.subr.mxu0 0.0
    %193 = vmatpush1.msra.mxu0 %v170
    %194 = vmatprep.subr.mxu0 0.0
    %195 = vmatpush1.msra.mxu0 %v171
    %196 = vmatprep.subr.mxu0 0.0
    %197 = vmatpush1.msra.mxu0 %v172
    %198 = vmatprep.subr.mxu0 0.0
    %199 = vmatpush1.msra.mxu0 %v173
    %200 = vmatprep.subr.mxu0 0.0
    %201 = vmatpush1.msra.mxu0 %v174
    %202 = vmatprep.subr.mxu0 0.0
    %203 = vmatpush1.msra.mxu0 %v175
    %204 = vmatprep.subr.mxu0 0.0
    %205 = vmatpush1.msra.mxu0 %v176
    %206 = vmatprep.subr.mxu0 0.0
    %207 = vmatpush1.msra.mxu0 %v177
    %208 = vmatprep.subr.mxu0 0.0
    %209 = vmatpush1.msra.mxu0 %v178
    %210 = vmatprep.subr.mxu0 0.0
    %211 = vmatpush1.msra.mxu0 %v179
    %212 = vmatprep.subr.mxu0 0.0
    %213 = vmatpush1.msra.mxu0 %v180
    %214 = vmatprep.subr.mxu0 0.0
    %215 = vmatpush1.msra.mxu0 %v181
    %216 = vmatprep.subr.mxu0 0.0
    %217 = vmatpush1.msra.mxu0 %v182
    %218 = vmatprep.subr.mxu0 0.0
    %219 = vmatpush1.msra.mxu0 %v183
    %220 = vmatprep.subr.mxu0 0.0
    %221 = vmatpush1.msra.mxu0 0.0
    %222 = vmatprep.subr.mxu0 0.0
    %223 = vmatpush1.msra.mxu0 0.0
    %224 = vmatprep.subr.mxu0 0.0
    %225 = vmatpush1.msra.mxu0 0.0
    %226 = vmatprep.subr.mxu0 0.0
    %227 = vmatpush1.msra.mxu0 0.0
    %228 = vmatprep.subr.mxu0 0.0
    %229 = vmatpush1.msra.mxu0 0.0
    %230 = vmatprep.subr.mxu0 0.0
    %231 = vmatpush1.msra.mxu0 0.0
    %232 = vmatprep.subr.mxu0 0.0
    %233 = vmatpush1.msra.mxu0 0.0
    %234 = vmatprep.subr.mxu0 0.0
    %235 = vmatpush1.msra.mxu0 0.0
    %236 = vmatprep.subr.mxu0 0.0
    %237 = vmatpush1.msra.mxu0 0.0
    %238 = vmatprep.subr.mxu0 0.0
    %239 = vmatpush1.msra.mxu0 0.0
    %240 = vmatprep.subr.mxu0 0.0
    %241 = vmatpush1.msra.mxu0 0.0
    %242 = vmatprep.subr.mxu0 0.0
    %243 = vmatpush1.msra.mxu0 0.0
    %244 = vmatprep.subr.mxu0 0.0
    %245 = vmatpush1.msra.mxu0 0.0
    %246 = vmatprep.subr.mxu0 0.0
    %247 = vmatpush1.msra.mxu0 0.0
    %248 = vmatprep.subr.mxu0 0.0
    %249 = vmatpush1.msra.mxu0 0.0
    %250 = vmatprep.subr.mxu0 0.0
    %251 = vmatpush1.msra.mxu0 0.0
    %252 = vmatprep.mubr.f32.mxu0 0.0
    %253 = vmatmul.mubr.f32.gmra.mrb[0].mxu0 %v167
    %v254 = vpop.f32.mrb[0].mxu0
    %v255 = vadd.f32 %v187, %v254
    %v256 = vpop.f32.mrb[0].mxu0
    %257 = vdwg.mxu0
    %v258 = vmul.f32 %v255, 0.5
    %v259 = vtanh.pop %v258
    %v260 = vadd.f32 %v259, 1.0
    %v261 = vmul.f32 %v260, 0.5
    %v262 = vld [vmem:[#allocation8] sm:$0xff]
    %v263 = vld [vmem:[#allocation8 + $0x8] sm:$0xff]
    %v264 = vld [vmem:[#allocation8 + $0x10] sm:$0xff]
    %v265 = vld [vmem:[#allocation8 + $0x18] sm:$0xff]
    %v266 = vld [vmem:[#allocation8 + $0x20] sm:$0xff]
    %v267 = vld [vmem:[#allocation8 + $0x28] sm:$0xff]
    %v268 = vld [vmem:[#allocation8 + $0x30] sm:$0xff]
    %v269 = vld [vmem:[#allocation8 + $0x38] sm:$0xff]
    %v270 = vld [vmem:[#allocation8 + $0x40] sm:$0xff]
    %v271 = vld [vmem:[#allocation8 + $0x48] sm:$0xff]
    %v272 = vld [vmem:[#allocation8 + $0x50] sm:$0xff]
    %v273 = vld [vmem:[#allocation8 + $0x58] sm:$0xff]
    %v274 = vld [vmem:[#allocation8 + $0x60] sm:$0xff]
    %v275 = vld [vmem:[#allocation8 + $0x68] sm:$0xff]
    %v276 = vld [vmem:[#allocation8 + $0x70] sm:$0xff]
    %v277 = vld [vmem:[#allocation8 + $0x78] sm:$0xff]
    %v278 = vlaneseq
    %v279 = vshrl.u32 %v278, 7
    %v280 = vsub.s32 0, %v279
    %v281 = vrot.slane %v77, %v280
    %282 = vmatprep.subr.mxu0 0.0
    %283 = vmatpush1.msra.mxu0 %v262
    %284 = vmatprep.subr.mxu0 0.0
    %285 = vmatpush1.msra.mxu0 %v263
    %286 = vmatprep.subr.mxu0 0.0
    %287 = vmatpush1.msra.mxu0 %v264
    %288 = vmatprep.subr.mxu0 0.0
    %289 = vmatpush1.msra.mxu0 %v265
    %290 = vmatprep.subr.mxu0 0.0
    %291 = vmatpush1.msra.mxu0 %v266
    %292 = vmatprep.subr.mxu0 0.0
    %293 = vmatpush1.msra.mxu0 %v267
    %294 = vmatprep.subr.mxu0 0.0
    %295 = vmatpush1.msra.mxu0 %v268
    %296 = vmatprep.subr.mxu0 0.0
    %297 = vmatpush1.msra.mxu0 %v269
    %298 = vmatprep.subr.mxu0 0.0
    %299 = vmatpush1.msra.mxu0 %v270
    %300 = vmatprep.subr.mxu0 0.0
    %301 = vmatpush1.msra.mxu0 %v271
    %302 = vmatprep.subr.mxu0 0.0
    %303 = vmatpush1.msra.mxu0 %v272
    %304 = vmatprep.subr.mxu0 0.0
    %305 = vmatpush1.msra.mxu0 %v273
    %306 = vmatprep.subr.mxu0 0.0
    %307 = vmatpush1.msra.mxu0 %v274
    %308 = vmatprep.subr.mxu0 0.0
    %309 = vmatpush1.msra.mxu0 %v275
    %310 = vmatprep.subr.mxu0 0.0
    %311 = vmatpush1.msra.mxu0 %v276
    %312 = vmatprep.subr.mxu0 0.0
    %313 = vmatpush1.msra.mxu0 %v277
    %314 = vmatprep.subr.mxu0 0.0
    %315 = vmatpush1.msra.mxu0 0.0
    %316 = vmatprep.subr.mxu0 0.0
    %317 = vmatpush1.msra.mxu0 0.0
    %318 = vmatprep.subr.mxu0 0.0
    %319 = vmatpush1.msra.mxu0 0.0
    %320 = vmatprep.subr.mxu0 0.0
    %321 = vmatpush1.msra.mxu0 0.0
    %322 = vmatprep.subr.mxu0 0.0
    %323 = vmatpush1.msra.mxu0 0.0
    %324 = vmatprep.subr.mxu0 0.0
    %325 = vmatpush1.msra.mxu0 0.0
    %326 = vmatprep.subr.mxu0 0.0
    %327 = vmatpush1.msra.mxu0 0.0
    %328 = vmatprep.subr.mxu0 0.0
    %329 = vmatpush1.msra.mxu0 0.0
    %330 = vmatprep.subr.mxu0 0.0
    %331 = vmatpush1.msra.mxu0 0.0
    %332 = vmatprep.subr.mxu0 0.0
    %333 = vmatpush1.msra.mxu0 0.0
    %334 = vmatprep.subr.mxu0 0.0
    %335 = vmatpush1.msra.mxu0 0.0
    %336 = vmatprep.subr.mxu0 0.0
    %337 = vmatpush1.msra.mxu0 0.0
    %338 = vmatprep.subr.mxu0 0.0
    %339 = vmatpush1.msra.mxu0 0.0
    %340 = vmatprep.subr.mxu0 0.0
    %341 = vmatpush1.msra.mxu0 0.0
    %342 = vmatprep.subr.mxu0 0.0
    %343 = vmatpush1.msra.mxu0 0.0
    %344 = vmatprep.subr.mxu0 0.0
    %345 = vmatpush1.msra.mxu0 0.0
    %346 = vmatprep.mubr.f32.mxu0 0.0
    %347 = vmatmul.mubr.f32.gmra.mrb[0].mxu0 %v261
    %v348 = vpop.f32.mrb[0].mxu0
    %v349 = vadd.f32 %v281, %v348
    %v350 = vpop.f32.mrb[0].mxu0
    %351 = vdwg.mxu0
    %352 = vmax.xlane.f32.xlu0 %v349
    %v353 = vpop.xlane.xlu0 %352
    %v354 = vsub.f32 %v349, %v353
    %v355 = vmul.f32 %v354, 1.442695
    %v356 = vpow.pop %v355
    %357 = vadd.xlane.f32.xlu0 %v356
    %v358 = vpop.xlane.xlu0 %357
    %v359 = vrcp.pop %v358
    %v360 = vmul.f32 %v356, %v359
    %vm361 = vcmask 80896
    %362 = vst.msk [vmem:[#allocation10] sm:$0xff] %vm361, %v360
    // Predicated region
    $region38: #{tpu_custom_call.1} parent=1 // pred_check
      _
    $region39: #{tpu_custom_call.1} parent=1 // pred_check_branch
      %364 = sbr.rel (0) target = $region41
    $region40: #{tpu_custom_call.1} parent=1 // pred_region
      %s366 = ssub.s32 128, 128
      %367 = vsyncadd [#allocation4], %s366
      %s369 = sshll.u32 [#allocation10], 4
      %s370 = int_to_ptr.vmem [resolvable:$true] %s369
      %372 = dma.vmem_to_hbm [thread:$0]  %s370, 128, %s5, [#allocation4]
    $region41: #{tpu_custom_call.1} parent=1 // pred_fallthru
      _
    // Predicated region
    $region42: #{tpu_custom_call.1} parent=1 // pred_check
      _
    $region43: #{tpu_custom_call.1} parent=1 // pred_check_branch
      %374 = sbr.rel (0) target = $region45
    $region44: #{tpu_custom_call.1} parent=1 // pred_region
      %375 = dma.done [#allocation4], 128
    $region45: #{tpu_custom_call.1} parent=1 // pred_fallthru
      _
    %376 = vsyncpa [#allocation3], 1
    %377 = vsyncpa [#allocation6], 1
    %378 = vsyncpa [#allocation9], 1
    %379 = vsyncpa [#allocation4], 1

</llo_original>
